<compile_context>
chip_gen: v7x
topology: tpu7x:2x2x1
jax: 0.10.0
libtpu: 0.0.40
codegen_flags: <defaults>
</compile_context>

<pallas_src>
import math

import jax
import jax.numpy as jnp
from jax.experimental import pallas as pl
from jax.experimental.pallas import tpu as pltpu


# --------------------------------------------------------------------------- #
# Helpers
# --------------------------------------------------------------------------- #
def _round_up(x: int, m: int) -> int:
    return ((x + m - 1) // m) * m


def _n_from_m(M: int) -> int:
    n = (math.isqrt(8 * M + 1) - 1) // 2
    if n * (n + 1) // 2 != M:
        raise ValueError(f"feature dim {M} is not of the form n*(n+1)/2")
    return n


def _vmem_capacity_bytes() -> int:
    """Generation-aware VMEM capacity; conservative fallback = v7x (64 MiB)."""
    try:
        cap = getattr(pltpu.get_tpu_info(), "vmem_capacity_bytes", None)
        if cap:
            return int(cap)
    except Exception:
        pass
    return 64 << 20


def _make_gather_matrix(n: int, nn_pad: int, dtype) -> jax.Array:
    """G[m, i*n + j] = 1 iff m == row-major triu offset of (min(i,j), max(i,j)).

    Columns beyond n*n are zero padding (so the padded output lanes are zeros
    and simply sliced away in the wrapper).
    """
    M = n * (n + 1) // 2
    ar = jnp.arange(n)
    p = jnp.minimum(ar[:, None], ar[None, :])                 # triu row of (i, j)
    q = jnp.maximum(ar[:, None], ar[None, :])                 # triu col of (i, j)
    idx = p * n - p * (p - 1) // 2 + (q - p)                  # row-major triu offset
    g = jax.nn.one_hot(idx.reshape(n * n), M, dtype=dtype).T  # (M, n*n), exactly one-hot
    return jnp.pad(g, ((0, 0), (0, nn_pad - n * n)))          # (M, NN_pad)


def _split_planes(x):
    """Exact decomposition of the input into bf16 MXU planes (3x8 bits = f32's 24)."""
    if x.dtype == jnp.float32:
        x0 = x.astype(jnp.bfloat16)
        r1 = x - x0.astype(jnp.float32)            # exact in f32
        x1 = r1.astype(jnp.bfloat16)
        x2 = (r1 - x1.astype(jnp.float32)).astype(jnp.bfloat16)   # residual fits bf16
        return (x0, x1, x2)
    # bf16 / f16: the one-hot gather is already exact in a single DEFAULT pass.
    return (x,)


def _pick_batch_tile(B: int, per_row_bytes: int, resident_bytes: int,
                     vmem_budget: int) -> int:
    if B <= 8:
        return B
    # >= 2 grid steps when B allows (v7x megacore sharding), <= 512 rows
    # (already ~85%+ of HBM roofline per measured tiled-op data), multiple of 8.
    tb = min(512, max(8, _round_up(pl.cdiv(B, 2), 8)))
    # Shrink to fit the VMEM budget (double-buffered in/out tiles + resident G).
    while tb > 8 and resident_bytes + tb * per_row_bytes > vmem_budget:
        tb = max(8, _round_up(tb // 2, 8))
    return tb


# --------------------------------------------------------------------------- #
# Kernel
# --------------------------------------------------------------------------- #
def _make_kernel(num_planes: int):
    dims = (((1,), (0,)), ((), ()))

    def kernel(*refs):
        # refs = (x_plane_0, ..., x_plane_{P-1}, g, out)
        g = refs[num_planes][...]                  # (M, TN) one-hot (bf16), grid-inv. in b
        o_ref = refs[num_planes + 1]               # (TB, TN)
        acc = jax.lax.dot_general(refs[0][...], g, dimension_numbers=dims,
                                  preferred_element_type=jnp.float32)
        for p in range(1, num_planes):             # (x0 + x1) + x2 order: exact reconstruction
            acc = acc + jax.lax.dot_general(refs[p][...], g, dimension_numbers=dims,
                                            preferred_element_type=jnp.float32)
        o_ref[...] = acc.astype(o_ref.dtype)

    return kernel


# --------------------------------------------------------------------------- #
# Wrapper
# --------------------------------------------------------------------------- #
@jax.jit
def spd_unvectorize(x):
    """x: (B, M) with M = n*(n+1)/2  ->  (B, n, n) symmetric matrices."""
    B, M = x.shape
    n = _n_from_m(M)
    NN = n * n
    NN_pad = _round_up(NN, 128)                    # lane-dense output slab

    planes = _split_planes(x)
    num_planes = len(planes)
    plane_dtype = planes[0].dtype
    g = _make_gather_matrix(n, NN_pad, plane_dtype)

    plane_isz = jnp.dtype(plane_dtype).itemsize
    out_isz = jnp.dtype(x.dtype).itemsize

    # Output-column tiling (bounds G's VMEM residency for large n).
    TN = min(NN_pad, 1024)
    g_tile_bytes = M * TN * plane_isz
    single_buffer_g = g_tile_bytes > (2 << 20)     # only worth it when G is big
    g_resident = g_tile_bytes * (1 if single_buffer_g else 2)

    vmem_cap = _vmem_capacity_bytes()
    per_row = 2 * (num_planes * M * plane_isz + TN * out_isz)  # dbl-buffered in + out
    TB = _pick_batch_tile(B, per_row, g_resident, int(0.45 * vmem_cap))

    grid = (pl.cdiv(NN_pad, TN), pl.cdiv(B, TB))   # (col tiles, batch tiles); inner=batch

    in_specs = [pl.BlockSpec((TB, M), lambda j, b: (b, 0)) for _ in range(num_planes)]
    g_spec_kwargs = {}
    if single_buffer_g:
        g_spec_kwargs["pipeline_mode"] = pl.Buffered(buffer_count=1)
    in_specs.append(pl.BlockSpec((M, TN), lambda j, b: (0, j), **g_spec_kwargs))

    cp_kwargs = dict(dimension_semantics=("parallel", "parallel"))
    vmem_need = g_resident + TB * per_row + (2 << 20)
    if vmem_need > (32 << 20):                     # raise the scoped limit only if needed
        cp_kwargs["vmem_limit_bytes"] = min(int(0.85 * vmem_cap), vmem_need + (4 << 20))

    cost = pl.CostEstimate(
        flops=2 * num_planes * B * M * NN_pad,     # actual MXU pass count
        transcendentals=0,
        bytes_accessed=(num_planes * B * M * plane_isz
                        + M * NN_pad * plane_isz
                        + B * NN_pad * out_isz),
    )

    out_flat = pl.pallas_call(
        _make_kernel(num_planes),
        out_shape=jax.ShapeDtypeStruct((B, NN_pad), x.dtype),
        grid_spec=pltpu.PrefetchScalarGridSpec(
            num_scalar_prefetch=0,
            grid=grid,
            in_specs=in_specs,
            out_specs=pl.BlockSpec((TB, TN), lambda j, b: (b, j)),
        ),
        compiler_params=pltpu.CompilerParams(**cp_kwargs),
        cost_estimate=cost,
    )(*planes, g)

    return out_flat[:, :NN].reshape(B, n, n)


# --------------------------------------------------------------------------- #
# Pure-JAX reference of the PyTorch forward
# --------------------------------------------------------------------------- #
def spd_unvectorize_ref(x):
    B, M = x.shape
    n = _n_from_m(M)
    iu_r, iu_c = jnp.triu_indices(n)               # same row-major order as torch
    out = jnp.zeros((B, n, n), x.dtype)
    out = out.at[:, iu_r, iu_c].set(x)
    out = out + jnp.swapaxes(out, 1, 2)
    d = jnp.arange(n)
    out = out.at[:, d, d].multiply(0.5)
    return out


if __name__ == "__main__":
    key = jax.random.PRNGKey(0)

    B, N = 8, 16                                   # small demo shapes
    M = N * (N + 1) // 2                           # 136 upper-triangle entries

    x = jax.random.normal(key, (B, M), dtype=jnp.float32)

    out = jax.block_until_ready(spd_unvectorize(x))
    ref = spd_unvectorize_ref(x)

    assert out.shape == (B, N, N)
    assert jnp.allclose(out, ref, atol=1e-6, rtol=1e-6), "mismatch vs reference"
    # Result must be symmetric with the upper triangle equal to the input.
    assert jnp.allclose(out, jnp.swapaxes(out, 1, 2), atol=1e-6)

    print("KERNEL_OK")
</pallas_src>

<mosaic_0001>
module attributes {stable_mosaic.version = 11 : i64} {
  func.func @kernel(%arg0: i32, %arg1: i32, %arg2: memref<8x136xbf16, #tpu.memory_space<vmem>>, %arg3: memref<8x136xbf16, #tpu.memory_space<vmem>>, %arg4: memref<8x136xbf16, #tpu.memory_space<vmem>>, %arg5: memref<136x256xbf16, #tpu.memory_space<vmem>>, %arg6: memref<8x256xf32, #tpu.memory_space<vmem>>) attributes {dimension_semantics = [#tpu.dimension_semantics<parallel>, #tpu.dimension_semantics<parallel>], iteration_bounds = array<i64: 1, 1>, scalar_prefetch = 0 : i64, scratch_operands = 0 : i64, tpu.core_type = #tpu.core_type<tc>, window_params = [{transform_indices = @transform_0, window_bounds = array<i64: 8, 136>}, {transform_indices = @transform_1, window_bounds = array<i64: 8, 136>}, {transform_indices = @transform_2, window_bounds = array<i64: 8, 136>}, {transform_indices = @transform_3, window_bounds = array<i64: 136, 256>}, {transform_indices = @transform_4, window_bounds = array<i64: 8, 256>}]} {
    %c0 = arith.constant 0 : index
    %c0_0 = arith.constant 0 : index
    %0 = vector.load %arg5[%c0, %c0_0] : memref<136x256xbf16, #tpu.memory_space<vmem>>, vector<136x256xbf16>
    %c0_1 = arith.constant 0 : index
    %c0_2 = arith.constant 0 : index
    %1 = vector.load %arg2[%c0_1, %c0_2] : memref<8x136xbf16, #tpu.memory_space<vmem>>, vector<8x136xbf16>
    %cst = arith.constant dense<0.000000e+00> : vector<8x256xf32>
    %2 = tpu.matmul %1, %0, %cst {dimension_numbers = #tpu.dot_dimension_numbers<[1], [0], [0], [1], [0, 0, 1, 1], [], []>} : vector<8x136xbf16>, vector<136x256xbf16>, vector<8x256xf32> -> vector<8x256xf32>
    %c0_3 = arith.constant 0 : index
    %c0_4 = arith.constant 0 : index
    %3 = vector.load %arg3[%c0_3, %c0_4] : memref<8x136xbf16, #tpu.memory_space<vmem>>, vector<8x136xbf16>
    %cst_5 = arith.constant dense<0.000000e+00> : vector<8x256xf32>
    %4 = tpu.matmul %3, %0, %cst_5 {dimension_numbers = #tpu.dot_dimension_numbers<[1], [0], [0], [1], [0, 0, 1, 1], [], []>} : vector<8x136xbf16>, vector<136x256xbf16>, vector<8x256xf32> -> vector<8x256xf32>
    %5 = arith.addf %2, %4 : vector<8x256xf32>
    %c0_6 = arith.constant 0 : index
    %c0_7 = arith.constant 0 : index
    %6 = vector.load %arg4[%c0_6, %c0_7] : memref<8x136xbf16, #tpu.memory_space<vmem>>, vector<8x136xbf16>
    %cst_8 = arith.constant dense<0.000000e+00> : vector<8x256xf32>
    %7 = tpu.matmul %6, %0, %cst_8 {dimension_numbers = #tpu.dot_dimension_numbers<[1], [0], [0], [1], [0, 0, 1, 1], [], []>} : vector<8x136xbf16>, vector<136x256xbf16>, vector<8x256xf32> -> vector<8x256xf32>
    %8 = arith.addf %5, %7 : vector<8x256xf32>
    %c0_9 = arith.constant 0 : index
    %c0_10 = arith.constant 0 : index
    %9 = vector.load %arg6[%c0_9, %c0_10] : memref<8x256xf32, #tpu.memory_space<vmem>>, vector<8x256xf32>
    tpu.vector_store %arg6[%c0_9, %c0_10], %8 {strides = array<i32>} : memref<8x256xf32, #tpu.memory_space<vmem>>, vector<8x256xf32>,
    return
  }
  func.func @transform_0(%arg0: i32, %arg1: i32) -> (i32, i32) {
    %c0_i32 = arith.constant 0 : i32
    %c0_i32_0 = arith.constant 0 : i32
    return %arg1, %c0_i32 : i32, i32
  }
  func.func @transform_1(%arg0: i32, %arg1: i32) -> (i32, i32) {
    %c0_i32 = arith.constant 0 : i32
    %c0_i32_0 = arith.constant 0 : i32
    return %arg1, %c0_i32 : i32, i32
  }
  func.func @transform_2(%arg0: i32, %arg1: i32) -> (i32, i32) {
    %c0_i32 = arith.constant 0 : i32
    %c0_i32_0 = arith.constant 0 : i32
    return %arg1, %c0_i32 : i32, i32
  }
  func.func @transform_3(%arg0: i32, %arg1: i32) -> (i32, i32) {
    %c0_i32 = arith.constant 0 : i32
    %c0_i32_0 = arith.constant 0 : i32
    return %c0_i32, %arg0 : i32, i32
  }
  func.func @transform_4(%arg0: i32, %arg1: i32) -> (i32, i32) {
    %c0_i32 = arith.constant 0 : i32
    return %arg1, %arg0 : i32, i32
  }
}

</mosaic_0001>

<llo_original>
// kernel: spd_unvectorize.1
$region0: #{spd_unvectorize.1}
  #allocation0 [shape = 'u32[]', space=smem, size = 0x4, offset = 0x4, fixed_abs, tag = 'smem constant byte address 0x4 - core index']
  #allocation1 [shape = 'u32[144,128]{1,0:T(1,128)}', space=vmem, size = 0x12000, scoped, tag = 'internal scratch']
  %s0 = inlined_call_operand.vmem [shape: bf16[8,136], index: 0, kind: input, shape index: {}]
  %s1 = inlined_call_operand.vmem [shape: bf16[8,136], index: 1, kind: input, shape index: {}]
  %s2 = inlined_call_operand.vmem [shape: bf16[8,136], index: 2, kind: input, shape index: {}]
  %s3 = inlined_call_operand.vmem [shape: bf16[136,256], index: 3, kind: input, shape index: {}]
  %s4 = inlined_call_operand.vmem [shape: f32[8,256], index: 4, kind: output, shape index: {}]
  %s5 = sld [smem:[#allocation0]]
  $region26: #{spd_unvectorize.1} parent=0
    _
  %s7 = ssub.s32 1, %s5
  %s8 = scalar_select 0, %s7, %s5
  // Predicated region
  $region2: #{spd_unvectorize.1} parent=0 // pred_check
    _
  $region3: #{spd_unvectorize.1} parent=0 // pred_check_branch
    %10 = sbr.rel (0) target = $region5
  $region4: #{spd_unvectorize.1} parent=0 // pred_region
    _
  $region5: #{spd_unvectorize.1} parent=0 // pred_fallthru
    _
  // Predicated region
  $region6: #{spd_unvectorize.1} parent=0 // pred_check
    _
  $region7: #{spd_unvectorize.1} parent=0 // pred_check_branch
    %12 = sbr.rel (0) target = $region9
  $region8: #{spd_unvectorize.1} parent=0 // pred_region
    _
  $region9: #{spd_unvectorize.1} parent=0 // pred_fallthru
    _
  // Predicated region
  $region10: #{spd_unvectorize.1} parent=0 // pred_check
    _
  $region11: #{spd_unvectorize.1} parent=0 // pred_check_branch
    %14 = sbr.rel (0) target = $region13
  $region12: #{spd_unvectorize.1} parent=0 // pred_region
    _
  $region13: #{spd_unvectorize.1} parent=0 // pred_fallthru
    _
  // Predicated region
  $region14: #{spd_unvectorize.1} parent=0 // pred_check
    _
  $region15: #{spd_unvectorize.1} parent=0 // pred_check_branch
    %16 = sbr.rel (0) target = $region17
  $region16: #{spd_unvectorize.1} parent=0 // pred_region
    _
  $region17: #{spd_unvectorize.1} parent=0 // pred_fallthru
    _
  %v18 = vld [vmem:[%s3] sm:$0xff]
  %v19 = vld [vmem:[%s3 + $0x8] sm:$0xff]
  %v20 = vld [vmem:[%s3 + $0x10] sm:$0xff]
  %v21 = vld [vmem:[%s3 + $0x18] sm:$0xff]
  %v22 = vld [vmem:[%s3 + $0x20] sm:$0xff]
  %v23 = vld [vmem:[%s3 + $0x28] sm:$0xff]
  %v24 = vld [vmem:[%s3 + $0x30] sm:$0xff]
  %v25 = vld [vmem:[%s3 + $0x38] sm:$0xff]
  %v26 = vld [vmem:[%s3 + $0x40] sm:$0xff]
  %v27 = vld [vmem:[%s3 + $0x48] sm:$0xff]
  %v28 = vld [vmem:[%s3 + $0x50] sm:$0xff]
  %v29 = vld [vmem:[%s3 + $0x58] sm:$0xff]
  %v30 = vld [vmem:[%s3 + $0x60] sm:$0xff]
  %v31 = vld [vmem:[%s3 + $0x68] sm:$0xff]
  %v32 = vld [vmem:[%s3 + $0x70] sm:$0xff]
  %v33 = vld [vmem:[%s3 + $0x78] sm:$0xff]
  %v34 = vld [vmem:[%s3 + $0x80] sm:$0xff]
  %v35 = vld [vmem:[%s0] sm:$0xff]
  %v36 = vld [vmem:[%s1] sm:$0xff]
  %v38 = vunpack.c.l.b16 %v36
  %v39 = vunpack.c.h.b16 %v36
  %v40 = vpack.c.b16 %v38, %v38
  %v41 = vpack.c.b16 %v39, %v39
  %v60 = vunpack.c.l.b16 %v18
  %v61 = vunpack.c.h.b16 %v18
  %v62 = vunpack.c.l.b16 %v19
  %v63 = vunpack.c.h.b16 %v19
  %v64 = vunpack.c.l.b16 %v20
  %v65 = vunpack.c.h.b16 %v20
  %v66 = vunpack.c.l.b16 %v21
  %v67 = vunpack.c.h.b16 %v21
  %v68 = vunpack.c.l.b16 %v22
  %v69 = vunpack.c.h.b16 %v22
  %v70 = vunpack.c.l.b16 %v23
  %v71 = vunpack.c.h.b16 %v23
  %v72 = vunpack.c.l.b16 %v24
  %v73 = vunpack.c.h.b16 %v24
  %v74 = vunpack.c.l.b16 %v25
  %v75 = vunpack.c.h.b16 %v25
  %v76 = vunpack.c.l.b16 %v26
  %v77 = vunpack.c.h.b16 %v26
  %v78 = vunpack.c.l.b16 %v27
  %v79 = vunpack.c.h.b16 %v27
  %v80 = vunpack.c.l.b16 %v28
  %v81 = vunpack.c.h.b16 %v28
  %v82 = vunpack.c.l.b16 %v29
  %v83 = vunpack.c.h.b16 %v29
  %v84 = vunpack.c.l.b16 %v30
  %v85 = vunpack.c.h.b16 %v30
  %v86 = vunpack.c.l.b16 %v31
  %v87 = vunpack.c.h.b16 %v31
  %v88 = vunpack.c.l.b16 %v32
  %v89 = vunpack.c.h.b16 %v32
  %v90 = vunpack.c.l.b16 %v33
  %v91 = vunpack.c.h.b16 %v33
  %v92 = vunpack.c.l.b16 %v34
  %v93 = vunpack.c.h.b16 %v34
  %v94 = vpack.c.b16 %v62, %v60
  %v95 = vpack.c.b16 %v63, %v61
  %v96 = vpack.c.b16 %v66, %v64
  %v97 = vpack.c.b16 %v67, %v65
  %v98 = vpack.c.b16 %v70, %v68
  %v99 = vpack.c.b16 %v71, %v69
  %v100 = vpack.c.b16 %v74, %v72
  %v101 = vpack.c.b16 %v75, %v73
  %v102 = vpack.c.b16 %v78, %v76
  %v103 = vpack.c.b16 %v79, %v77
  %v104 = vpack.c.b16 %v82, %v80
  %v105 = vpack.c.b16 %v83, %v81
  %v106 = vpack.c.b16 %v86, %v84
  %v107 = vpack.c.b16 %v87, %v85
  %v108 = vpack.c.b16 %v90, %v88
  %v109 = vpack.c.b16 %v91, %v89
  %v110 = vpack.c.b16 %v92, %v92
  %v111 = vpack.c.b16 %v93, %v93
  %vm128 = vcmask 64512
  %v130 = vsel %vm128, %v41, 0
  %vm132 = vcmask 1043456
  %v134 = vsel %vm132, %v110, 0
  %v137 = vsel %vm132, %v111, 0
  %139 = vmatprep.subr.bf16.mxu0 %v95
  %140 = vmatpush1.bf16.msra.mxu0 %v94
  %141 = vmatprep.subr.bf16.mxu0 %v97
  %142 = vmatpush1.bf16.msra.mxu0 %v96
  %143 = vmatprep.subr.bf16.mxu0 %v99
  %144 = vmatpush1.bf16.msra.mxu0 %v98
  %145 = vmatprep.subr.bf16.mxu0 %v101
  %146 = vmatpush1.bf16.msra.mxu0 %v100
  %147 = vmatprep.subr.bf16.mxu0 %v103
  %148 = vmatpush1.bf16.msra.mxu0 %v102
  %149 = vmatprep.subr.bf16.mxu0 %v105
  %150 = vmatpush1.bf16.msra.mxu0 %v104
  %151 = vmatprep.subr.bf16.mxu0 %v107
  %152 = vmatpush1.bf16.msra.mxu0 %v106
  %153 = vmatprep.subr.bf16.mxu0 %v109
  %154 = vmatpush1.bf16.msra.mxu0 %v108
  %155 = vmatprep.subr.bf16.mxu0 %v137
  %156 = vmatpush1.bf16.msra.mxu0 %v134
  %157 = vmatprep.subr.bf16.mxu0 0
  %158 = vmatpush1.bf16.msra.mxu0 0
  %159 = vmatprep.subr.bf16.mxu0 0
  %160 = vmatpush1.bf16.msra.mxu0 0
  %161 = vmatprep.subr.bf16.mxu0 0
  %162 = vmatpush1.bf16.msra.mxu0 0
  %163 = vmatprep.subr.bf16.mxu0 0
  %164 = vmatpush1.bf16.msra.mxu0 0
  %165 = vmatprep.subr.bf16.mxu0 0
  %166 = vmatpush1.bf16.msra.mxu0 0
  %167 = vmatprep.subr.bf16.mxu0 0
  %168 = vmatpush1.bf16.msra.mxu0 0
  %169 = vmatprep.subr.bf16.mxu0 0
  %170 = vmatpush1.bf16.msra.mxu0 0
  %171 = vmatprep.mubr.bf16.mxu0 %v130
  %172 = vmatmul.mubr.bf16.gmra.mrb[0].mxu0 %v40
  %v173 = vpop.f32.mrb[0].mxu0
  %v174 = vadd.f32 0.0, %v173
  %v175 = vpop.f32.mrb[0].mxu0
  %v176 = vadd.f32 0.0, %v175
  %v177 = vpop.f32.mrb[0].mxu0
  %v178 = vpop.f32.mrb[0].mxu0
  %179 = vdwg.mxu0
  %v181 = vunpack.c.l.b16 %v35
  %v182 = vunpack.c.h.b16 %v35
  %v183 = vpack.c.b16 %v181, %v181
  %v184 = vpack.c.b16 %v182, %v182
  %v187 = vsel %vm128, %v184, 0
  %189 = vmatprep.subr.bf16.mxu0 %v95
  %190 = vmatpush1.bf16.msra.mxu0 %v94
  %191 = vmatprep.subr.bf16.mxu0 %v97
  %192 = vmatpush1.bf16.msra.mxu0 %v96
  %193 = vmatprep.subr.bf16.mxu0 %v99
  %194 = vmatpush1.bf16.msra.mxu0 %v98
  %195 = vmatprep.subr.bf16.mxu0 %v101
  %196 = vmatpush1.bf16.msra.mxu0 %v100
  %197 = vmatprep.subr.bf16.mxu0 %v103
  %198 = vmatpush1.bf16.msra.mxu0 %v102
  %199 = vmatprep.subr.bf16.mxu0 %v105
  %200 = vmatpush1.bf16.msra.mxu0 %v104
  %201 = vmatprep.subr.bf16.mxu0 %v107
  %202 = vmatpush1.bf16.msra.mxu0 %v106
  %203 = vmatprep.subr.bf16.mxu0 %v109
  %204 = vmatpush1.bf16.msra.mxu0 %v108
  %205 = vmatprep.subr.bf16.mxu0 %v137
  %206 = vmatpush1.bf16.msra.mxu0 %v134
  %207 = vmatprep.subr.bf16.mxu0 0
  %208 = vmatpush1.bf16.msra.mxu0 0
  %209 = vmatprep.subr.bf16.mxu0 0
  %210 = vmatpush1.bf16.msra.mxu0 0
  %211 = vmatprep.subr.bf16.mxu0 0
  %212 = vmatpush1.bf16.msra.mxu0 0
  %213 = vmatprep.subr.bf16.mxu0 0
  %214 = vmatpush1.bf16.msra.mxu0 0
  %215 = vmatprep.subr.bf16.mxu0 0
  %216 = vmatpush1.bf16.msra.mxu0 0
  %217 = vmatprep.subr.bf16.mxu0 0
  %218 = vmatpush1.bf16.msra.mxu0 0
  %219 = vmatprep.subr.bf16.mxu0 0
  %220 = vmatpush1.bf16.msra.mxu0 0
  %221 = vmatprep.mubr.bf16.mxu0 %v187
  %222 = vmatmul.mubr.bf16.gmra.mrb[0].mxu0 %v183
  %v223 = vpop.f32.mrb[0].mxu0
  %v224 = vadd.f32 %v174, %v223
  %v225 = vpop.f32.mrb[0].mxu0
  %v226 = vadd.f32 %v176, %v225
  %v227 = vpop.f32.mrb[0].mxu0
  %v228 = vpop.f32.mrb[0].mxu0
  %229 = vdwg.mxu0
  %v230 = vld [vmem:[%s2] sm:$0xff]
  %v232 = vunpack.c.l.b16 %v230
  %v233 = vunpack.c.h.b16 %v230
  %v234 = vpack.c.b16 %v232, %v232
  %v235 = vpack.c.b16 %v233, %v233
  %v238 = vsel %vm128, %v235, 0
  %240 = vmatprep.subr.bf16.mxu0 %v95
  %241 = vmatpush1.bf16.msra.mxu0 %v94
  %242 = vmatprep.subr.bf16.mxu0 %v97
  %243 = vmatpush1.bf16.msra.mxu0 %v96
  %244 = vmatprep.subr.bf16.mxu0 %v99
  %245 = vmatpush1.bf16.msra.mxu0 %v98
  %246 = vmatprep.subr.bf16.mxu0 %v101
  %247 = vmatpush1.bf16.msra.mxu0 %v100
  %248 = vmatprep.subr.bf16.mxu0 %v103
  %249 = vmatpush1.bf16.msra.mxu0 %v102
  %250 = vmatprep.subr.bf16.mxu0 %v105
  %251 = vmatpush1.bf16.msra.mxu0 %v104
  %252 = vmatprep.subr.bf16.mxu0 %v107
  %253 = vmatpush1.bf16.msra.mxu0 %v106
  %254 = vmatprep.subr.bf16.mxu0 %v109
  %255 = vmatpush1.bf16.msra.mxu0 %v108
  %256 = vmatprep.subr.bf16.mxu0 %v137
  %257 = vmatpush1.bf16.msra.mxu0 %v134
  %258 = vmatprep.subr.bf16.mxu0 0
  %259 = vmatpush1.bf16.msra.mxu0 0
  %260 = vmatprep.subr.bf16.mxu0 0
  %261 = vmatpush1.bf16.msra.mxu0 0
  %262 = vmatprep.subr.bf16.mxu0 0
  %263 = vmatpush1.bf16.msra.mxu0 0
  %264 = vmatprep.subr.bf16.mxu0 0
  %265 = vmatpush1.bf16.msra.mxu0 0
  %266 = vmatprep.subr.bf16.mxu0 0
  %267 = vmatpush1.bf16.msra.mxu0 0
  %268 = vmatprep.subr.bf16.mxu0 0
  %269 = vmatpush1.bf16.msra.mxu0 0
  %270 = vmatprep.subr.bf16.mxu0 0
  %271 = vmatpush1.bf16.msra.mxu0 0
  %272 = vmatprep.mubr.bf16.mxu0 %v238
  %273 = vmatmul.mubr.bf16.gmra.mrb[0].mxu0 %v234
  %v274 = vpop.f32.mrb[0].mxu0
  %v275 = vadd.f32 0.0, %v274
  %v276 = vpop.f32.mrb[0].mxu0
  %v277 = vadd.f32 0.0, %v276
  %v278 = vpop.f32.mrb[0].mxu0
  %v279 = vpop.f32.mrb[0].mxu0
  %280 = vdwg.mxu0
  %v281 = vadd.f32 %v224, %v275
  %v282 = vadd.f32 %v226, %v277
  %283 = vst [vmem:[%s4] sm:$0xff] %v281
  %284 = vst [vmem:[%s4 + $0x8] sm:$0xff] %v282
  // Predicated region
  $region18: #{spd_unvectorize.1} parent=0 // pred_check
    _
  $region19: #{spd_unvectorize.1} parent=0 // pred_check_branch
    %286 = sbr.rel (0) target = $region21
  $region20: #{spd_unvectorize.1} parent=0 // pred_region
    _
  $region21: #{spd_unvectorize.1} parent=0 // pred_fallthru
    _
  // Predicated region
  $region22: #{spd_unvectorize.1} parent=0 // pred_check
    _
  $region23: #{spd_unvectorize.1} parent=0 // pred_check_branch
    %288 = sbr.rel (0) target = $region25
  $region24: #{spd_unvectorize.1} parent=0 // pred_region
    _
  $region25: #{spd_unvectorize.1} parent=0 // pred_fallthru
    _

</llo_original>
